<compile_context>
chip_gen: v5e
topology: v5e:2x2
jax: 0.10.0
libtpu: 0.0.40
codegen_flags: <defaults>
</compile_context>

<pallas_src>
import math
import jax
import jax.numpy as jnp
from jax.experimental import pallas as pl
from jax.experimental.pallas import tpu as pltpu

# Problem sizes (small, consistent with the module's forward semantics).
B, C, H, W = 2, 4, 16, 16
HIDDEN = 32
T_STEPS = 8
N_ROWS = B * H * W          # 512 pixels -> lane axis


# ---------------------------------------------------------------------------
# Fused Pallas kernel: all reverse steps + finalize in one launch.
# Grid step g corresponds to time step i = T_STEPS - 1 - g (tables pre-reversed).
# ---------------------------------------------------------------------------
def ddpm_fused_kernel(coef_ref, x0_ref, noise_ref, w1t_ref, b1tab_ref,
                      w2t_ref, b2_ref, out_ref, x_sc):
    g = pl.program_id(0)

    # Load x_T into the resident VMEM carry on the first grid step.
    @pl.when(g == 0)
    def _():
        x_sc[...] = x0_ref[...]

    x = x_sc[...]                                                  # (C, N)

    # --- synthetic noise-prediction model (1x1-conv MLP, temb folded in bias) ---
    h = jnp.dot(w1t_ref[...], x,
                preferred_element_type=jnp.float32) + b1tab_ref[0]  # (HIDDEN, N)
    h = h * jax.nn.sigmoid(h)                                       # SiLU
    pred_noise = jnp.dot(w2t_ref[...], h,
                         preferred_element_type=jnp.float32) + b2_ref[...]  # (C, N)

    # per-step scalar coefficients (SMEM table, already in reverse-time order)
    a   = coef_ref[g, 0]   # sqrt(1 / alpha_bar_t)
    bc  = coef_ref[g, 1]   # sqrt((1 - alpha_bar_t) / alpha_bar_t)
    c0  = coef_ref[g, 2]   # posterior_mean_coeff_x0
    c1  = coef_ref[g, 3]   # posterior_mean_coeff_xt
    sig = coef_ref[g, 4]   # posterior std (sigma_t)

    # predict_x0 + clamp(-1, 1)  (clip_denoised=True)
    x_recon = jnp.clip(a * x - bc * pred_noise, -1.0, 1.0)
    # q_mean_std posterior mean, then x_{t-1} = mean + std * noise
    mean = c0 * x_recon + c1 * x
    x_new = mean + sig * noise_ref[0]
    x_sc[...] = x_new

    # Finalize on the last reverse step (time_step == 0): x0.clip(-1,1)*0.5+0.5
    @pl.when(g == pl.num_programs(0) - 1)
    def _():
        out_ref[...] = jnp.clip(x_new, -1.0, 1.0) * 0.5 + 0.5


def ddpm_sample_pallas(coef, x0, noise, w1t, b1tab, w2t, b2):
    return pl.pallas_call(
        ddpm_fused_kernel,
        out_shape=jax.ShapeDtypeStruct((C, N_ROWS), jnp.float32),
        grid=(T_STEPS,),
        in_specs=[
            pl.BlockSpec(memory_space=pltpu.MemorySpace.SMEM),       # coef (T, 8)
            pl.BlockSpec((C, N_ROWS), lambda g: (0, 0)),             # x_T
            pl.BlockSpec((1, C, N_ROWS), lambda g: (g, 0, 0)),       # noise[g]
            pl.BlockSpec((HIDDEN, C), lambda g: (0, 0)),             # w1^T
            pl.BlockSpec((1, HIDDEN, 1), lambda g: (g, 0, 0)),       # b1 + temb[g]
            pl.BlockSpec((C, HIDDEN), lambda g: (0, 0)),             # w2^T
            pl.BlockSpec((C, 1), lambda g: (0, 0)),                  # b2
        ],
        out_specs=pl.BlockSpec((C, N_ROWS), lambda g: (0, 0)),       # resident
        scratch_shapes=[pltpu.VMEM((C, N_ROWS), jnp.float32)],       # x carry
        compiler_params=pltpu.CompilerParams(
            dimension_semantics=("arbitrary",)),
    )(coef, x0, noise, w1t, b1tab, w2t, b2)


# ---------------------------------------------------------------------------
# DDPM schedule (glue, plain JAX — mirrors DDPMBase / DDPMSampler __init__)
# ---------------------------------------------------------------------------
def make_schedule(t_steps):
    betas = jnp.linspace(1e-4, 0.02, t_steps, dtype=jnp.float32)
    alphas = 1.0 - betas
    alphas_cumprod = jnp.cumprod(alphas)
    alphas_cumprod_prev = jnp.concatenate(
        [jnp.ones((1,), jnp.float32), alphas_cumprod[:-1]])
    sqrt_recip_alphas_cumprod = jnp.sqrt(1.0 / alphas_cumprod)
    sqrt_recipm1_alphas_bar = jnp.sqrt((1.0 - alphas_cumprod) / alphas_cumprod)
    variance = (1.0 - alphas) * (1.0 - alphas_cumprod_prev) / (1.0 - alphas_cumprod)
    sigma = jnp.sqrt(variance)
    coeff_x0 = jnp.sqrt(alphas_cumprod_prev) * (1.0 - alphas) / (1.0 - alphas_cumprod)
    coeff_xt = (1.0 - alphas_cumprod_prev) * jnp.sqrt(alphas) / (1.0 - alphas_cumprod)
    return sqrt_recip_alphas_cumprod, sqrt_recipm1_alphas_bar, coeff_x0, coeff_xt, sigma


def time_embedding(step, dim):
    half = dim // 2
    freqs = jnp.exp(-math.log(10000.0) *
                    jnp.arange(half, dtype=jnp.float32) / half)
    args = jnp.float32(step) * freqs
    return jnp.concatenate([jnp.sin(args), jnp.cos(args)])      # (dim,)


@jax.jit
def ddpm_sample(x_t_nchw, w1, b1, w2, b2, key):
    """Equivalent of DDPMSampler.forward(x_t, clip_denoised=True) — one dispatch."""
    a, bc, c0, c1, sig = make_schedule(T_STEPS)

    # Tables in grid order (grid step g -> time step i = T_STEPS - 1 - g).
    idx = jnp.arange(T_STEPS - 1, -1, -1)
    zeros = jnp.zeros((T_STEPS,), jnp.float32)
    coef = jnp.stack([a[idx], bc[idx], c0[idx], c1[idx], sig[idx],
                      zeros, zeros, zeros], axis=1).astype(jnp.float32)   # (T, 8)

    # Time embedding folded into layer-1 bias: (T, HIDDEN, 1).
    tembs = jnp.stack([time_embedding(i, HIDDEN)
                       for i in range(T_STEPS - 1, -1, -1)], axis=0)      # (T, HIDDEN)
    b1tab = (tembs + b1.reshape(1, HIDDEN)).reshape(T_STEPS, HIDDEN, 1)

    # Per-step noise, zeroed at time_step == 0 (last grid step).
    noise = jax.random.normal(key, (T_STEPS, C, N_ROWS), jnp.float32)
    noise = noise.at[T_STEPS - 1].set(0.0)

    # NCHW -> (C, N): pixels on the lane axis.
    x0 = jnp.transpose(x_t_nchw, (1, 0, 2, 3)).reshape(C, N_ROWS).astype(jnp.float32)

    out = ddpm_sample_pallas(coef, x0, noise,
                             w1.T, b1tab, w2.T, b2.reshape(C, 1))
    # (C, N) -> NCHW
    return jnp.transpose(out.reshape(C, B, H, W), (1, 0, 2, 3))


# ---------------------------------------------------------------------------
if __name__ == "__main__":
    key = jax.random.PRNGKey(0)
    k1, k2, kx, kn = jax.random.split(key, 4)

    # deterministic synthetic model parameters
    w1 = jax.random.normal(k1, (C, HIDDEN), jnp.float32) * 0.1
    b1 = jnp.zeros((1, HIDDEN), jnp.float32)
    w2 = jax.random.normal(k2, (HIDDEN, C), jnp.float32) * 0.1
    b2 = jnp.zeros((1, C), jnp.float32)

    # input x_T ~ N(0, I), NCHW like the PyTorch module
    x_t = jax.random.normal(kx, (B, C, H, W), jnp.float32)

    out = ddpm_sample(x_t, w1, b1, w2, b2, kn)
    jax.block_until_ready(out)
    assert out.shape == (B, C, H, W)
    print("KERNEL_OK")
</pallas_src>

<mosaic_0001>
module attributes {stable_mosaic.version = 11 : i64} {
  func.func @ddpm_fused_kernel(%arg0: i32, %arg1: memref<8x8xf32, #tpu.memory_space<smem>>, %arg2: memref<4x512xf32, #tpu.memory_space<vmem>>, %arg3: memref<1x4x512xf32, #tpu.memory_space<vmem>>, %arg4: memref<32x4xf32, #tpu.memory_space<vmem>>, %arg5: memref<1x32x1xf32, #tpu.memory_space<vmem>>, %arg6: memref<4x32xf32, #tpu.memory_space<vmem>>, %arg7: memref<4x1xf32, #tpu.memory_space<vmem>>, %arg8: memref<4x512xf32, #tpu.memory_space<vmem>>, %arg9: memref<4x512xf32, #tpu.memory_space<vmem>>) attributes {dimension_semantics = [#tpu.dimension_semantics<arbitrary>], iteration_bounds = array<i64: 8>, scalar_prefetch = 0 : i64, scratch_operands = 1 : i64, tpu.core_type = #tpu.core_type<tc>, window_params = [{transform_indices = @transform_0, window_bounds = array<i64: 8, 8>}, {pipeline_mode = #tpu.pipeline_mode<synchronous>, transform_indices = @transform_1, window_bounds = array<i64: 4, 512>}, {transform_indices = @transform_2, window_bounds = array<i64: 1, 4, 512>}, {pipeline_mode = #tpu.pipeline_mode<synchronous>, transform_indices = @transform_3, window_bounds = array<i64: 32, 4>}, {transform_indices = @transform_4, window_bounds = array<i64: 1, 32, 1>}, {pipeline_mode = #tpu.pipeline_mode<synchronous>, transform_indices = @transform_5, window_bounds = array<i64: 4, 32>}, {pipeline_mode = #tpu.pipeline_mode<synchronous>, transform_indices = @transform_6, window_bounds = array<i64: 4, 1>}, {pipeline_mode = #tpu.pipeline_mode<synchronous>, transform_indices = @transform_7, window_bounds = array<i64: 4, 512>}]} {
    %c0_i32 = arith.constant 0 : i32
    %0 = arith.cmpi eq, %arg0, %c0_i32 : i32
    %1 = arith.extui %0 : i1 to i32
    %c0_i32_0 = arith.constant 0 : i32
    %2 = arith.cmpi ne, %1, %c0_i32_0 : i32
    scf.if %2 {
      %c0_22 = arith.constant 0 : index
      %c0_23 = arith.constant 0 : index
      %54 = vector.load %arg2[%c0_22, %c0_23] : memref<4x512xf32, #tpu.memory_space<vmem>>, vector<4x512xf32>
      %c0_24 = arith.constant 0 : index
      %c0_25 = arith.constant 0 : index
      %55 = vector.load %arg9[%c0_24, %c0_25] : memref<4x512xf32, #tpu.memory_space<vmem>>, vector<4x512xf32>
      tpu.vector_store %arg9[%c0_24, %c0_25], %54 {strides = array<i32>} : memref<4x512xf32, #tpu.memory_space<vmem>>, vector<4x512xf32>,
    } else {
    }
    %c0 = arith.constant 0 : index
    %c0_1 = arith.constant 0 : index
    %3 = vector.load %arg9[%c0, %c0_1] : memref<4x512xf32, #tpu.memory_space<vmem>>, vector<4x512xf32>
    %c0_2 = arith.constant 0 : index
    %c0_3 = arith.constant 0 : index
    %4 = vector.load %arg4[%c0_2, %c0_3] : memref<32x4xf32, #tpu.memory_space<vmem>>, vector<32x4xf32>
    %cst = arith.constant dense<0.000000e+00> : vector<32x512xf32>
    %5 = tpu.matmul %4, %3, %cst {dimension_numbers = #tpu.dot_dimension_numbers<[1], [0], [0], [1], [0, 0, 1, 1], [], []>} : vector<32x4xf32>, vector<4x512xf32>, vector<32x512xf32> -> vector<32x512xf32>
    %c0_4 = arith.constant 0 : index
    %c0_5 = arith.constant 0 : index
    %c0_6 = arith.constant 0 : index
    %6 = vector.load %arg5[%c0_4, %c0_5, %c0_6] : memref<1x32x1xf32, #tpu.memory_space<vmem>>, vector<1x32x1xf32>
    %7 = vector.shape_cast %6 : vector<1x32x1xf32> to vector<32x1xf32>
    %8 = vector.broadcast %7 : vector<32x1xf32> to vector<32x512xf32>
    %9 = arith.addf %5, %8 : vector<32x512xf32>
    %10 = arith.negf %9 : vector<32x512xf32>
    %11 = math.exp %10 : vector<32x512xf32>
    %cst_7 = arith.constant 1.000000e+00 : f32
    %12 = vector.broadcast %cst_7 : f32 to vector<32x512xf32>
    %13 = arith.addf %12, %11 : vector<32x512xf32>
    %14 = arith.divf %12, %13 : vector<32x512xf32>
    %15 = arith.mulf %9, %14 : vector<32x512xf32>
    %c0_8 = arith.constant 0 : index
    %c0_9 = arith.constant 0 : index
    %16 = vector.load %arg6[%c0_8, %c0_9] : memref<4x32xf32, #tpu.memory_space<vmem>>, vector<4x32xf32>
    %cst_10 = arith.constant dense<0.000000e+00> : vector<4x512xf32>
    %17 = tpu.matmul %16, %15, %cst_10 {dimension_numbers = #tpu.dot_dimension_numbers<[1], [0], [0], [1], [0, 0, 1, 1], [], []>} : vector<4x32xf32>, vector<32x512xf32>, vector<4x512xf32> -> vector<4x512xf32>
    %c0_11 = arith.constant 0 : index
    %c0_12 = arith.constant 0 : index
    %18 = vector.load %arg7[%c0_11, %c0_12] : memref<4x1xf32, #tpu.memory_space<vmem>>, vector<4x1xf32>
    %19 = vector.broadcast %18 : vector<4x1xf32> to vector<4x512xf32>
    %20 = arith.addf %17, %19 : vector<4x512xf32>
    %21 = arith.index_cast %arg0 : i32 to index
    %c0_13 = arith.constant 0 : index
    %22 = memref.load %arg1[%21, %c0_13] : memref<8x8xf32, #tpu.memory_space<smem>>
    %23 = arith.index_cast %arg0 : i32 to index
    %c1 = arith.constant 1 : index
    %24 = memref.load %arg1[%23, %c1] : memref<8x8xf32, #tpu.memory_space<smem>>
    %25 = arith.index_cast %arg0 : i32 to index
    %c2 = arith.constant 2 : index
    %26 = memref.load %arg1[%25, %c2] : memref<8x8xf32, #tpu.memory_space<smem>>
    %27 = arith.index_cast %arg0 : i32 to index
    %c3 = arith.constant 3 : index
    %28 = memref.load %arg1[%27, %c3] : memref<8x8xf32, #tpu.memory_space<smem>>
    %29 = arith.index_cast %arg0 : i32 to index
    %c4 = arith.constant 4 : index
    %30 = memref.load %arg1[%29, %c4] : memref<8x8xf32, #tpu.memory_space<smem>>
    %31 = vector.broadcast %22 : f32 to vector<4x512xf32>
    %32 = arith.mulf %31, %3 : vector<4x512xf32>
    %33 = vector.broadcast %24 : f32 to vector<4x512xf32>
    %34 = arith.mulf %33, %20 : vector<4x512xf32>
    %35 = arith.subf %32, %34 : vector<4x512xf32>
    %cst_14 = arith.constant -1.000000e+00 : f32
    %cst_15 = arith.constant 1.000000e+00 : f32
    %36 = vector.broadcast %cst_14 : f32 to vector<4x512xf32>
    %37 = arith.maximumf %36, %35 : vector<4x512xf32>
    %38 = vector.broadcast %cst_15 : f32 to vector<4x512xf32>
    %39 = arith.minimumf %38, %37 : vector<4x512xf32>
    %40 = vector.broadcast %26 : f32 to vector<4x512xf32>
    %41 = arith.mulf %40, %39 : vector<4x512xf32>
    %42 = vector.broadcast %28 : f32 to vector<4x512xf32>
    %43 = arith.mulf %42, %3 : vector<4x512xf32>
    %44 = arith.addf %41, %43 : vector<4x512xf32>
    %c0_16 = arith.constant 0 : index
    %c0_17 = arith.constant 0 : index
    %c0_18 = arith.constant 0 : index
    %45 = vector.load %arg3[%c0_16, %c0_17, %c0_18] : memref<1x4x512xf32, #tpu.memory_space<vmem>>, vector<1x4x512xf32>
    %46 = vector.shape_cast %45 : vector<1x4x512xf32> to vector<4x512xf32>
    %47 = vector.broadcast %30 : f32 to vector<4x512xf32>
    %48 = arith.mulf %47, %46 : vector<4x512xf32>
    %49 = arith.addf %44, %48 : vector<4x512xf32>
    %c0_19 = arith.constant 0 : index
    %c0_20 = arith.constant 0 : index
    %50 = vector.load %arg9[%c0_19, %c0_20] : memref<4x512xf32, #tpu.memory_space<vmem>>, vector<4x512xf32>
    tpu.vector_store %arg9[%c0_19, %c0_20], %49 {strides = array<i32>} : memref<4x512xf32, #tpu.memory_space<vmem>>, vector<4x512xf32>,
    %c7_i32 = arith.constant 7 : i32
    %51 = arith.cmpi eq, %arg0, %c7_i32 : i32
    %52 = arith.extui %51 : i1 to i32
    %c0_i32_21 = arith.constant 0 : i32
    %53 = arith.cmpi ne, %52, %c0_i32_21 : i32
    scf.if %53 {
      %cst_22 = arith.constant -1.000000e+00 : f32
      %cst_23 = arith.constant 1.000000e+00 : f32
      %54 = vector.broadcast %cst_22 : f32 to vector<4x512xf32>
      %55 = arith.maximumf %54, %49 : vector<4x512xf32>
      %56 = vector.broadcast %cst_23 : f32 to vector<4x512xf32>
      %57 = arith.minimumf %56, %55 : vector<4x512xf32>
      %cst_24 = arith.constant 5.000000e-01 : f32
      %58 = vector.broadcast %cst_24 : f32 to vector<4x512xf32>
      %59 = arith.mulf %57, %58 : vector<4x512xf32>
      %cst_25 = arith.constant 5.000000e-01 : f32
      %60 = vector.broadcast %cst_25 : f32 to vector<4x512xf32>
      %61 = arith.addf %59, %60 : vector<4x512xf32>
      %c0_26 = arith.constant 0 : index
      %c0_27 = arith.constant 0 : index
      %62 = vector.load %arg8[%c0_26, %c0_27] : memref<4x512xf32, #tpu.memory_space<vmem>>, vector<4x512xf32>
      tpu.vector_store %arg8[%c0_26, %c0_27], %61 {strides = array<i32>} : memref<4x512xf32, #tpu.memory_space<vmem>>, vector<4x512xf32>,
    } else {
    }
    return
  }
  func.func @transform_0(%arg0: i32) -> (i32, i32) {
    %c0_i32 = arith.constant 0 : i32
    %c0_i32_0 = arith.constant 0 : i32
    %c0_i32_1 = arith.constant 0 : i32
    return %c0_i32, %c0_i32_0 : i32, i32
  }
  func.func @transform_1(%arg0: i32) -> (i32, i32) {
    %c0_i32 = arith.constant 0 : i32
    %c0_i32_0 = arith.constant 0 : i32
    %c0_i32_1 = arith.constant 0 : i32
    return %c0_i32, %c0_i32_0 : i32, i32
  }
  func.func @transform_2(%arg0: i32) -> (i32, i32, i32) {
    %c0_i32 = arith.constant 0 : i32
    %c0_i32_0 = arith.constant 0 : i32
    %c0_i32_1 = arith.constant 0 : i32
    return %arg0, %c0_i32, %c0_i32_0 : i32, i32, i32
  }
  func.func @transform_3(%arg0: i32) -> (i32, i32) {
    %c0_i32 = arith.constant 0 : i32
    %c0_i32_0 = arith.constant 0 : i32
    %c0_i32_1 = arith.constant 0 : i32
    return %c0_i32, %c0_i32_0 : i32, i32
  }
  func.func @transform_4(%arg0: i32) -> (i32, i32, i32) {
    %c0_i32 = arith.constant 0 : i32
    %c0_i32_0 = arith.constant 0 : i32
    %c0_i32_1 = arith.constant 0 : i32
    return %arg0, %c0_i32, %c0_i32_0 : i32, i32, i32
  }
  func.func @transform_5(%arg0: i32) -> (i32, i32) {
    %c0_i32 = arith.constant 0 : i32
    %c0_i32_0 = arith.constant 0 : i32
    %c0_i32_1 = arith.constant 0 : i32
    return %c0_i32, %c0_i32_0 : i32, i32
  }
  func.func @transform_6(%arg0: i32) -> (i32, i32) {
    %c0_i32 = arith.constant 0 : i32
    %c0_i32_0 = arith.constant 0 : i32
    %c0_i32_1 = arith.constant 0 : i32
    return %c0_i32, %c0_i32_0 : i32, i32
  }
  func.func @transform_7(%arg0: i32) -> (i32, i32) {
    %c0_i32 = arith.constant 0 : i32
    %c0_i32_0 = arith.constant 0 : i32
    %c0_i32_1 = arith.constant 0 : i32
    return %c0_i32, %c0_i32_0 : i32, i32
  }
}

</mosaic_0001>

<llo_original>
// kernel: ddpm_sample.1
$region0: #{ddpm_sample.1}
  #allocation0 [shape = 'u32[]', space=smem, size = 0x4, offset = 0x4, fixed_abs, tag = 'smem constant byte address 0x4 - core index']
  #allocation1 [shape = 'u32[72,128]{1,0:T(1,128)}', space=vmem, size = 0x9000, scoped, tag = 'internal scratch']
  #allocation2 [shape = 'f32[4,512]{1,0:T(4,128)}', space=vmem, size = 0x2000, scoped, tag = 'scratch operand']
  %s0 = inlined_call_operand.vmem [shape: f32[8,8], index: 0, kind: input, shape index: {}]
  %s1 = inlined_call_operand.vmem [shape: f32[4,512], index: 1, kind: input, shape index: {}]
  %s2 = inlined_call_operand.vmem [shape: f32[8,4,512], index: 2, kind: input, shape index: {}]
  %s3 = inlined_call_operand.vmem [shape: f32[32,4], index: 3, kind: input, shape index: {}]
  %s4 = inlined_call_operand.vmem [shape: f32[8,32,1], index: 4, kind: input, shape index: {}]
  %s5 = inlined_call_operand.vmem [shape: f32[4,32], index: 5, kind: input, shape index: {}]
  %s6 = inlined_call_operand.vmem [shape: f32[4,1], index: 6, kind: input, shape index: {}]
  %s7 = inlined_call_operand.vmem [shape: f32[4,512], index: 7, kind: output, shape index: {}]
  %s8 = sld [smem:[#allocation0]]
  $region73: #{ddpm_sample.1} parent=0
    _
  %s10 = ssub.s32 1, %s8
  %s11 = scalar_select 0, %s10, %s8
  $region1: #{ddpm_sample.1} parent=0
    #allocation3 [shape = 'u8[4096]{0}', space=smem, size = 0x1000, scoped, tag = 'input window, operand 0, single buffered']
    #allocation4 [shape = 's32[2]{0}', space=sflag, size = 0x8, scoped, tag = 'scoped memory for ddpm_sample.1']
    %12 = vsyncpa [#allocation4], 0
    loop: start=0, step=1, limit=10
    $region2: #{ddpm_sample.1} parent=1 // loop_pre_header
      _
    $region3: #{ddpm_sample.1} parent=1 // loop_header
      %s14 = sphi 0, %s18
      %p15 = scmp.ge.s32.totalorder %s14, 10
      %s22 = sphi 0, %s22
      %s24 = sphi 0, %s22
      %s25 = sphi 0, %s24
      %s39 = sphi 0, %s25
      %s43 = sphi 0, %s43
      %s45 = sphi 0, %s43
      %s46 = sphi 0, %s45
      %s60 = sphi 0, %s46
      %s66 = sphi 0, %s68
      %s69 = sphi 0, %s66
      %s70 = sphi 0, %s69
      %s86 = sphi 0, %s70
      %s90 = sphi 0, %s90
      %s92 = sphi 0, %s90
      %s93 = sphi 0, %s92
      %s107 = sphi 0, %s93
      %s113 = sphi 0, %s115
      %s116 = sphi 0, %s113
      %s117 = sphi 0, %s116
      %s133 = sphi 0, %s117
      %s137 = sphi 0, %s137
      %s139 = sphi 0, %s137
      %s140 = sphi 0, %s139
      %s154 = sphi 0, %s140
      %s158 = sphi 0, %s158
      %s160 = sphi 0, %s158
      %s161 = sphi 0, %s160
      %s175 = sphi 0, %s161
      %s179 = sphi 0, %s179
      %s181 = sphi 0, %s179
      %s182 = sphi 0, %s181
      %s196 = sphi 0, %s182
    $region4: #{ddpm_sample.1} parent=1 // loop_header_branch
      %17 = sbr.rel (%p15) target = $region8
    $region5: #{ddpm_sample.1} parent=1 // loop_body
      %s19 = ssub.s32 %s14, 1
      %s20 = ssub.s32 %s14, 2
      %s21 = sadd.s32 %s14, 1
      %s23 = sadd.s32 %s22, 1
      %p26 = scmp.eq.s32.totalorder %s14, 7
      %p27 = scmp.ne.s32.totalorder %s22, %s24
      %p28 = scmp.eq.s32.totalorder %s14, 0
      %p29 = por %p27, %p28
      %p30 = scmp.ne.s32.totalorder %s22, %s24
      %p31 = scmp.eq.s32.totalorder %s19, 7
      %p32 = por %p30, %p31
      %p33 = scmp.ne.s32.totalorder %s24, %s25
      %p34 = scmp.eq.s32.totalorder %s19, 0
      %p35 = por %p33, %p34
      %p36 = scmp.ne.s32.totalorder %s24, %s25
      %p37 = scmp.eq.s32.totalorder %s20, 7
      %p38 = por %p36, %p37
      %p40 = scmp.ne.s32.totalorder %s25, %s39
      %p41 = scmp.eq.s32.totalorder %s20, 0
      %p42 = por %p40, %p41
      %s44 = sadd.s32 %s43, 1
      %p47 = scmp.eq.s32.totalorder %s14, 7
      %p48 = scmp.ne.s32.totalorder %s43, %s45
      %p49 = scmp.eq.s32.totalorder %s14, 0
      %p50 = por %p48, %p49
      %p51 = scmp.ne.s32.totalorder %s43, %s45
      %p52 = scmp.eq.s32.totalorder %s19, 7
      %p53 = por %p51, %p52
      %p54 = scmp.ne.s32.totalorder %s45, %s46
      %p55 = scmp.eq.s32.totalorder %s19, 0
      %p56 = por %p54, %p55
      %p57 = scmp.ne.s32.totalorder %s45, %s46
      %p58 = scmp.eq.s32.totalorder %s20, 7
      %p59 = por %p57, %p58
      %p61 = scmp.ne.s32.totalorder %s46, %s60
      %p62 = scmp.eq.s32.totalorder %s20, 0
      %p63 = por %p61, %p62
      %s64 = ssub.s32 %s14, %s21
      %p65 = scmp.eq.s32.totalorder %s64, 0
      %s67 = sadd.s32 %s66, 1
      %s68 = scalar_select %p65, %s66, %s67
      %p71 = pneg %p65
      %p72 = scmp.eq.s32.totalorder %s14, 7
      %p73 = por %p71, %p72
      %p74 = scmp.ne.s32.totalorder %s66, %s69
      %p75 = scmp.eq.s32.totalorder %s14, 0
      %p76 = por %p74, %p75
      %p77 = scmp.ne.s32.totalorder %s66, %s69
      %p78 = scmp.eq.s32.totalorder %s19, 7
      %p79 = por %p77, %p78
      %p80 = scmp.ne.s32.totalorder %s69, %s70
      %p81 = scmp.eq.s32.totalorder %s19, 0
      %p82 = por %p80, %p81
      %p83 = scmp.ne.s32.totalorder %s69, %s70
      %p84 = scmp.eq.s32.totalorder %s20, 7
      %p85 = por %p83, %p84
      %p87 = scmp.ne.s32.totalorder %s70, %s86
      %p88 = scmp.eq.s32.totalorder %s20, 0
      %p89 = por %p87, %p88
      %s91 = sadd.s32 %s90, 1
      %p94 = scmp.eq.s32.totalorder %s14, 7
      %p95 = scmp.ne.s32.totalorder %s90, %s92
      %p96 = scmp.eq.s32.totalorder %s14, 0
      %p97 = por %p95, %p96
      %p98 = scmp.ne.s32.totalorder %s90, %s92
      %p99 = scmp.eq.s32.totalorder %s19, 7
      %p100 = por %p98, %p99
      %p101 = scmp.ne.s32.totalorder %s92, %s93
      %p102 = scmp.eq.s32.totalorder %s19, 0
      %p103 = por %p101, %p102
      %p104 = scmp.ne.s32.totalorder %s92, %s93
      %p105 = scmp.eq.s32.totalorder %s20, 7
      %p106 = por %p104, %p105
      %p108 = scmp.ne.s32.totalorder %s93, %s107
      %p109 = scmp.eq.s32.totalorder %s20, 0
      %p110 = por %p108, %p109
      %s111 = ssub.s32 %s14, %s21
      %p112 = scmp.eq.s32.totalorder %s111, 0
      %s114 = sadd.s32 %s113, 1
      %s115 = scalar_select %p112, %s113, %s114
      %p118 = pneg %p112
      %p119 = scmp.eq.s32.totalorder %s14, 7
      %p120 = por %p118, %p119
      %p121 = scmp.ne.s32.totalorder %s113, %s116
      %p122 = scmp.eq.s32.totalorder %s14, 0
      %p123 = por %p121, %p122
      %p124 = scmp.ne.s32.totalorder %s113, %s116
      %p125 = scmp.eq.s32.totalorder %s19, 7
      %p126 = por %p124, %p125
      %p127 = scmp.ne.s32.totalorder %s116, %s117
      %p128 = scmp.eq.s32.totalorder %s19, 0
      %p129 = por %p127, %p128
      %p130 = scmp.ne.s32.totalorder %s116, %s117
      %p131 = scmp.eq.s32.totalorder %s20, 7
      %p132 = por %p130, %p131
      %p134 = scmp.ne.s32.totalorder %s117, %s133
      %p135 = scmp.eq.s32.totalorder %s20, 0
      %p136 = por %p134, %p135
      %s138 = sadd.s32 %s137, 1
      %p141 = scmp.eq.s32.totalorder %s14, 7
      %p142 = scmp.ne.s32.totalorder %s137, %s139
      %p143 = scmp.eq.s32.totalorder %s14, 0
      %p144 = por %p142, %p143
      %p145 = scmp.ne.s32.totalorder %s137, %s139
      %p146 = scmp.eq.s32.totalorder %s19, 7
      %p147 = por %p145, %p146
      %p148 = scmp.ne.s32.totalorder %s139, %s140
      %p149 = scmp.eq.s32.totalorder %s19, 0
      %p150 = por %p148, %p149
      %p151 = scmp.ne.s32.totalorder %s139, %s140
      %p152 = scmp.eq.s32.totalorder %s20, 7
      %p153 = por %p151, %p152
      %p155 = scmp.ne.s32.totalorder %s140, %s154
      %p156 = scmp.eq.s32.totalorder %s20, 0
      %p157 = por %p155, %p156
      %s159 = sadd.s32 %s158, 1
      %p162 = scmp.eq.s32.totalorder %s14, 7
      %p163 = scmp.ne.s32.totalorder %s158, %s160
      %p164 = scmp.eq.s32.totalorder %s14, 0
      %p165 = por %p163, %p164
      %p166 = scmp.ne.s32.totalorder %s158, %s160
      %p167 = scmp.eq.s32.totalorder %s19, 7
      %p168 = por %p166, %p167
      %p169 = scmp.ne.s32.totalorder %s160, %s161
      %p170 = scmp.eq.s32.totalorder %s19, 0
      %p171 = por %p169, %p170
      %p172 = scmp.ne.s32.totalorder %s160, %s161
      %p173 = scmp.eq.s32.totalorder %s20, 7
      %p174 = por %p172, %p173
      %p176 = scmp.ne.s32.totalorder %s161, %s175
      %p177 = scmp.eq.s32.totalorder %s20, 0
      %p178 = por %p176, %p177
      %s180 = sadd.s32 %s179, 1
      %p183 = scmp.eq.s32.totalorder %s14, 7
      %p184 = scmp.ne.s32.totalorder %s179, %s181
      %p185 = scmp.eq.s32.totalorder %s14, 0
      %p186 = por %p184, %p185
      %p187 = scmp.ne.s32.totalorder %s179, %s181
      %p188 = scmp.eq.s32.totalorder %s19, 7
      %p189 = por %p187, %p188
      %p190 = scmp.ne.s32.totalorder %s181, %s182
      %p191 = scmp.eq.s32.totalorder %s19, 0
      %p192 = por %p190, %p191
      %p193 = scmp.ne.s32.totalorder %s181, %s182
      %p194 = scmp.eq.s32.totalorder %s20, 7
      %p195 = por %p193, %p194
      %p197 = scmp.ne.s32.totalorder %s182, %s196
      %p198 = scmp.eq.s32.totalorder %s20, 0
      %p199 = por %p197, %p198
      %p200 = scmp.le.s32.totalorder 1, %s14
      %p201 = scmp.lt.s32.totalorder %s14, 9
      %p202 = pnand %p200, %p201
      %p203 = pneg %p202
      // Predicated region
      $region9: #{ddpm_sample.1} parent=5 // pred_check
        _
      $region10: #{ddpm_sample.1} parent=5 // pred_check_branch
        %205 = sbr.rel (%p202) target = $region12
      $region11: #{ddpm_sample.1} parent=5 // pred_region
        %s206 = ssub.s32 %s14, 1
        // Predicated region
        $region13: #{ddpm_sample.1} parent=11 // pred_check
          %p207 = pneg %p35
        $region14: #{ddpm_sample.1} parent=11 // pred_check_branch
          %209 = sbr.rel (%p207) target = $region16
        $region15: #{ddpm_sample.1} parent=11 // pred_region
          %211 = vsyncadd [#allocation4], 0
          %s213 = sshll.u32 %s0, 4
          %s214 = int_to_ptr.vmem [resolvable:$true] %s213
          %216 = dma.vmem_to_smem %s214, 128, [#allocation3], [#allocation4]
        $region16: #{ddpm_sample.1} parent=11 // pred_fallthru
          _
        // Predicated region
        $region17: #{ddpm_sample.1} parent=11 // pred_check
          %p217 = pneg %p56
        $region18: #{ddpm_sample.1} parent=11 // pred_check_branch
          %219 = sbr.rel (%p217) target = $region20
        $region19: #{ddpm_sample.1} parent=11 // pred_region
          _
        $region20: #{ddpm_sample.1} parent=11 // pred_fallthru
          _
        // Predicated region
        $region21: #{ddpm_sample.1} parent=11 // pred_check
          %p220 = pneg %p103
        $region22: #{ddpm_sample.1} parent=11 // pred_check_branch
          %222 = sbr.rel (%p220) target = $region24
        $region23: #{ddpm_sample.1} parent=11 // pred_region
          _
        $region24: #{ddpm_sample.1} parent=11 // pred_fallthru
          _
        // Predicated region
        $region25: #{ddpm_sample.1} parent=11 // pred_check
          %p223 = pneg %p150
        $region26: #{ddpm_sample.1} parent=11 // pred_check_branch
          %225 = sbr.rel (%p223) target = $region28
        $region27: #{ddpm_sample.1} parent=11 // pred_region
          _
        $region28: #{ddpm_sample.1} parent=11 // pred_fallthru
          _
        // Predicated region
        $region29: #{ddpm_sample.1} parent=11 // pred_check
          %p226 = pneg %p171
        $region30: #{ddpm_sample.1} parent=11 // pred_check_branch
          %228 = sbr.rel (%p226) target = $region32
        $region31: #{ddpm_sample.1} parent=11 // pred_region
          _
        $region32: #{ddpm_sample.1} parent=11 // pred_fallthru
          _
      $region12: #{ddpm_sample.1} parent=5 // pred_fallthru
        _
      %p229 = scmp.lt.s32.totalorder %s14, 8
      // Predicated region
      $region33: #{ddpm_sample.1} parent=5 // pred_check
        %p230 = pneg %p229
      $region34: #{ddpm_sample.1} parent=5 // pred_check_branch
        %232 = sbr.rel (%p230) target = $region36
      $region35: #{ddpm_sample.1} parent=5 // pred_region
        // Predicated region
        $region37: #{ddpm_sample.1} parent=35 // pred_check
          %p233 = pneg %p76
        $region38: #{ddpm_sample.1} parent=35 // pred_check_branch
          %235 = sbr.rel (%p233) target = $region40
        $region39: #{ddpm_sample.1} parent=35 // pred_region
          %p236 = scmp.lt.s32.totalorder %s14, 7
          %s237 = scalar_select %p236, %s14, 7
          %s238 = smul.addr %s237, 4
          %s239 = smul.addr %s238, 4
          %s240 = scalar_lea.vmem %s2, %s239
        $region40: #{ddpm_sample.1} parent=35 // pred_fallthru
          _
        // Predicated region
        $region41: #{ddpm_sample.1} parent=35 // pred_check
          %p241 = pneg %p123
        $region42: #{ddpm_sample.1} parent=35 // pred_check_branch
          %243 = sbr.rel (%p241) target = $region44
        $region43: #{ddpm_sample.1} parent=35 // pred_region
          %p244 = scmp.lt.s32.totalorder %s14, 7
          %s245 = scalar_select %p244, %s14, 7
          %s246 = smul.addr %s245, 4
          %s247 = smul.addr %s246, 8
          %s248 = scalar_lea.vmem %s4, %s247
        $region44: #{ddpm_sample.1} parent=35 // pred_fallthru
          _
      $region36: #{ddpm_sample.1} parent=5 // pred_fallthru
        _
      %p249 = scmp.le.s32.totalorder 1, %s14
      %p250 = scmp.lt.s32.totalorder %s14, 9
      %p251 = pnand %p249, %p250
      %p252 = pneg %p251
      // Predicated region
      $region45: #{ddpm_sample.1} parent=5 // pred_check
        _
      $region46: #{ddpm_sample.1} parent=5 // pred_check_branch
        %254 = sbr.rel (%p251) target = $region48
      $region47: #{ddpm_sample.1} parent=5 // pred_region
        %s255 = ssub.s32 %s14, 1
        // Predicated region
        $region49: #{ddpm_sample.1} parent=47 // pred_check
          %p256 = pneg %p35
        $region50: #{ddpm_sample.1} parent=47 // pred_check_branch
          %258 = sbr.rel (%p256) target = $region52
        $region51: #{ddpm_sample.1} parent=47 // pred_region
          %260 = dma.done [#allocation4], 128
        $region52: #{ddpm_sample.1} parent=47 // pred_fallthru
          _
        %261 = sfence
        %p262 = pneg %p35
        %p263 = pneg %p32
        %p264 = pneg %p56
        %p265 = pneg %p53
        %p266 = scmp.lt.s32.totalorder %s19, 7
        %s267 = scalar_select %p266, %s19, 7
        %s268 = smul.addr %s267, 4
        %s269 = smul.addr %s268, 4
        %s270 = scalar_lea.vmem %s2, %s269
        %p271 = pneg %p82
        %p272 = pneg %p79
        %p273 = pneg %p103
        %p274 = pneg %p100
        %p275 = scmp.lt.s32.totalorder %s19, 7
        %s276 = scalar_select %p275, %s19, 7
        %s277 = smul.addr %s276, 4
        %s278 = smul.addr %s277, 8
        %s279 = scalar_lea.vmem %s4, %s278
        %p280 = pneg %p129
        %p281 = pneg %p126
        %p282 = pneg %p150
        %p283 = pneg %p147
        %p284 = pneg %p171
        %p285 = pneg %p168
        %p286 = pneg %p192
        %p287 = pneg %p189
        %p288 = scmp.lt.s32.totalorder %s19, 7
        %s289 = scalar_select %p288, %s19, 7
        %s290 = smul.addr %s289, 4
        %s291 = smul.addr %s290, 4
        %s292 = scalar_lea.vmem %s2, %s291
        %p293 = scmp.lt.s32.totalorder %s19, 7
        %s294 = scalar_select %p293, %s19, 7
        %s295 = smul.addr %s294, 4
        %s296 = smul.addr %s295, 8
        %s297 = scalar_lea.vmem %s4, %s296
        %p298 = scmp.eq.s32.totalorder %s19, 0
        // Predicated region
        $region53: #{ddpm_sample.1} parent=47 // pred_check
          %p299 = pneg %p298
        $region54: #{ddpm_sample.1} parent=47 // pred_check_branch
          %301 = sbr.rel (%p299) target = $region56
        $region55: #{ddpm_sample.1} parent=47 // pred_region
          %v302 = vld [vmem:[%s1] sm:$0xff]
          %v303 = vld [vmem:[%s1 + $0x8] sm:$0xff]
          %304 = vst [vmem:[#allocation2] sm:$0xff] %v302
          %305 = vst [vmem:[#allocation2 + $0x8] sm:$0xff] %v303
        $region56: #{ddpm_sample.1} parent=47 // pred_fallthru
          _
        %v306 = vld [vmem:[#allocation2] sm:$0xff]
        %v307 = vld [vmem:[#allocation2 + $0x8] sm:$0xff]
        %v308 = vld [vmem:[%s3] sm:$0xff]
        %v309 = vld [vmem:[%s3 + $0x8] sm:$0xff]
        %v310 = vld [vmem:[%s3 + $0x10] sm:$0xff]
        %v311 = vld [vmem:[%s3 + $0x18] sm:$0xff]
        %v312 = vld [vmem:[%s297] sm:$0xff]
        %v313 = vld [vmem:[%s297 + $0x8] sm:$0xff]
        %v314 = vld [vmem:[%s297 + $0x10] sm:$0xff]
        %v315 = vld [vmem:[%s297 + $0x18] sm:$0xff]
        %317 = vset.pattern.permute.xlu0 0
        %318 = vperm.xlu0 %317, %v312
        %v319 = vpop.permute.xlu0 %318
        %322 = vset.pattern.permute.xlu0 0
        %323 = vperm.xlu0 %322, %v313
        %v324 = vpop.permute.xlu0 %323
        %327 = vset.pattern.permute.xlu0 0
        %328 = vperm.xlu0 %327, %v314
        %v329 = vpop.permute.xlu0 %328
        %332 = vset.pattern.permute.xlu0 0
        %333 = vperm.xlu0 %332, %v315
        %v334 = vpop.permute.xlu0 %333
        %338 = vst [vmem:[#allocation1] ss:$2 sm:$0xff] %v306
        %s339 = scalar_lea.vmem [#allocation1], 16
        %340 = vst [vmem:[%s339] ss:$2 sm:$0xff] %v307
        %v341 = vld.sshfl [vmem:[#allocation1] sm:$0xff pattern:$0x75316420]
        %v342 = vld.sshfl [vmem:[#allocation1 + $0x8] sm:$0xff pattern:$0x75316420]
        %v343 = vld.sshfl [vmem:[#allocation1 + $0x10] sm:$0xff pattern:$0x75316420]
        %v344 = vld.sshfl [vmem:[#allocation1 + $0x18] sm:$0xff pattern:$0x75316420]
        %vm345 = vcmask 31744
        %v347 = vsel %vm345, %v308, 0
        %v350 = vsel %vm345, %v309, 0
        %v353 = vsel %vm345, %v310, 0
        %v356 = vsel %vm345, %v311, 0
        %vm358 = vcmask 1043456
        %v359 = vsel %vm358, %v341, 0
        %v361 = vsel %vm358, %v342, 0
        %v363 = vsel %vm358, %v343, 0
        %v365 = vsel %vm358, %v344, 0
        %367 = vmatpush.msra.mxu0 0.0
        %368 = vmatpush.msra.mxu0 0.0
        %369 = vmatpush.msra.mxu0 0.0
        %370 = vmatpush.msra.mxu0 0.0
        %371 = vmatpush.msra.mxu0 0.0
        %372 = vmatpush.msra.mxu0 0.0
        %373 = vmatpush.msra.mxu0 0.0
        %374 = vmatpush.msra.mxu0 0.0
        %375 = vmatpush.msra.mxu0 0.0
        %376 = vmatpush.msra.mxu0 0.0
        %377 = vmatpush.msra.mxu0 0.0
        %378 = vmatpush.msra.mxu0 0.0
        %379 = vmatpush.msra.mxu0 0.0
        %380 = vmatpush.msra.mxu0 0.0
        %381 = vmatpush.msra.mxu0 0.0
        %382 = vmatpush.msra.mxu0 %v359
        %383 = vmatmul.f32.gmra.mxu0 %v347
        %v384 = vpop.f32.mrf.mxu0
        %v385 = vadd.f32 %v319, %v384
        %386 = vmatmul.f32.gmra.mxu0 %v350
        %v387 = vpop.f32.mrf.mxu0
        %v388 = vadd.f32 %v324, %v387
        %389 = vmatmul.f32.gmra.mxu0 %v353
        %v390 = vpop.f32.mrf.mxu0
        %v391 = vadd.f32 %v329, %v390
        %392 = vmatmul.f32.gmra.mxu0 %v356
        %v393 = vpop.f32.mrf.mxu0
        %v394 = vadd.f32 %v334, %v393
        %395 = vdwg.mxu0
        %396 = vmatpush.msra.mxu0 0.0
        %397 = vmatpush.msra.mxu0 0.0
        %398 = vmatpush.msra.mxu0 0.0
        %399 = vmatpush.msra.mxu0 0.0
        %400 = vmatpush.msra.mxu0 0.0
        %401 = vmatpush.msra.mxu0 0.0
        %402 = vmatpush.msra.mxu0 0.0
        %403 = vmatpush.msra.mxu0 0.0
        %404 = vmatpush.msra.mxu0 0.0
        %405 = vmatpush.msra.mxu0 0.0
        %406 = vmatpush.msra.mxu0 0.0
        %407 = vmatpush.msra.mxu0 0.0
        %408 = vmatpush.msra.mxu0 0.0
        %409 = vmatpush.msra.mxu0 0.0
        %410 = vmatpush.msra.mxu0 0.0
        %411 = vmatpush.msra.mxu0 %v361
        %412 = vmatmul.f32.gmra.mxu0 %v347
        %v413 = vpop.f32.mrf.mxu0
        %v414 = vadd.f32 %v319, %v413
        %415 = vmatmul.f32.gmra.mxu0 %v350
        %v416 = vpop.f32.mrf.mxu0
        %v417 = vadd.f32 %v324, %v416
        %418 = vmatmul.f32.gmra.mxu0 %v353
        %v419 = vpop.f32.mrf.mxu0
        %v420 = vadd.f32 %v329, %v419
        %421 = vmatmul.f32.gmra.mxu0 %v356
        %v422 = vpop.f32.mrf.mxu0
        %v423 = vadd.f32 %v334, %v422
        %424 = vdwg.mxu0
        %425 = vmatpush.msra.mxu0 0.0
        %426 = vmatpush.msra.mxu0 0.0
        %427 = vmatpush.msra.mxu0 0.0
        %428 = vmatpush.msra.mxu0 0.0
        %429 = vmatpush.msra.mxu0 0.0
        %430 = vmatpush.msra.mxu0 0.0
        %431 = vmatpush.msra.mxu0 0.0
        %432 = vmatpush.msra.mxu0 0.0
        %433 = vmatpush.msra.mxu0 0.0
        %434 = vmatpush.msra.mxu0 0.0
        %435 = vmatpush.msra.mxu0 0.0
        %436 = vmatpush.msra.mxu0 0.0
        %437 = vmatpush.msra.mxu0 0.0
        %438 = vmatpush.msra.mxu0 0.0
        %439 = vmatpush.msra.mxu0 0.0
        %440 = vmatpush.msra.mxu0 %v363
        %441 = vmatmul.f32.gmra.mxu0 %v347
        %v442 = vpop.f32.mrf.mxu0
        %v443 = vadd.f32 %v319, %v442
        %444 = vmatmul.f32.gmra.mxu0 %v350
        %v445 = vpop.f32.mrf.mxu0
        %v446 = vadd.f32 %v324, %v445
        %447 = vmatmul.f32.gmra.mxu0 %v353
        %v448 = vpop.f32.mrf.mxu0
        %v449 = vadd.f32 %v329, %v448
        %450 = vmatmul.f32.gmra.mxu0 %v356
        %v451 = vpop.f32.mrf.mxu0
        %v452 = vadd.f32 %v334, %v451
        %453 = vdwg.mxu0
        %454 = vmatpush.msra.mxu0 0.0
        %455 = vmatpush.msra.mxu0 0.0
        %456 = vmatpush.msra.mxu0 0.0
        %457 = vmatpush.msra.mxu0 0.0
        %458 = vmatpush.msra.mxu0 0.0
        %459 = vmatpush.msra.mxu0 0.0
        %460 = vmatpush.msra.mxu0 0.0
        %461 = vmatpush.msra.mxu0 0.0
        %462 = vmatpush.msra.mxu0 0.0
        %463 = vmatpush.msra.mxu0 0.0
        %464 = vmatpush.msra.mxu0 0.0
        %465 = vmatpush.msra.mxu0 0.0
        %466 = vmatpush.msra.mxu0 0.0
        %467 = vmatpush.msra.mxu0 0.0
        %468 = vmatpush.msra.mxu0 0.0
        %469 = vmatpush.msra.mxu0 %v365
        %470 = vmatmul.f32.gmra.mxu0 %v347
        %v471 = vpop.f32.mrf.mxu0
        %v472 = vadd.f32 %v319, %v471
        %473 = vmatmul.f32.gmra.mxu0 %v350
        %v474 = vpop.f32.mrf.mxu0
        %v475 = vadd.f32 %v324, %v474
        %476 = vmatmul.f32.gmra.mxu0 %v353
        %v477 = vpop.f32.mrf.mxu0
        %v478 = vadd.f32 %v329, %v477
        %479 = vmatmul.f32.gmra.mxu0 %v356
        %v480 = vpop.f32.mrf.mxu0
        %v481 = vadd.f32 %v334, %v480
        %482 = vdwg.mxu0
        %v483 = vxor.u32 %v385, 2147483648
        %v484 = vxor.u32 %v414, 2147483648
        %v485 = vxor.u32 %v443, 2147483648
        %v486 = vxor.u32 %v472, 2147483648
        %v487 = vxor.u32 %v388, 2147483648
        %v488 = vxor.u32 %v417, 2147483648
        %v489 = vxor.u32 %v446, 2147483648
        %v490 = vxor.u32 %v475, 2147483648
        %v491 = vxor.u32 %v391, 2147483648
        %v492 = vxor.u32 %v420, 2147483648
        %v493 = vxor.u32 %v449, 2147483648
        %v494 = vxor.u32 %v478, 2147483648
        %v495 = vxor.u32 %v394, 2147483648
        %v496 = vxor.u32 %v423, 2147483648
        %v497 = vxor.u32 %v452, 2147483648
        %v498 = vxor.u32 %v481, 2147483648
        %v499 = vmul.f32 %v483, 1.442695
        %v500 = vpow.pop %v499
        %v501 = vmul.f32 %v484, 1.442695
        %v502 = vpow.pop %v501
        %v503 = vmul.f32 %v485, 1.442695
        %v504 = vpow.pop %v503
        %v505 = vmul.f32 %v486, 1.442695
        %v506 = vpow.pop %v505
        %v507 = vmul.f32 %v487, 1.442695
        %v508 = vpow.pop %v507
        %v509 = vmul.f32 %v488, 1.442695
        %v510 = vpow.pop %v509
        %v511 = vmul.f32 %v489, 1.442695
        %v512 = vpow.pop %v511
        %v513 = vmul.f32 %v490, 1.442695
        %v514 = vpow.pop %v513
        %v515 = vmul.f32 %v491, 1.442695
        %v516 = vpow.pop %v515
        %v517 = vmul.f32 %v492, 1.442695
        %v518 = vpow.pop %v517
        %v519 = vmul.f32 %v493, 1.442695
        %v520 = vpow.pop %v519
        %v521 = vmul.f32 %v494, 1.442695
        %v522 = vpow.pop %v521
        %v523 = vmul.f32 %v495, 1.442695
        %v524 = vpow.pop %v523
        %v525 = vmul.f32 %v496, 1.442695
        %v526 = vpow.pop %v525
        %v527 = vmul.f32 %v497, 1.442695
        %v528 = vpow.pop %v527
        %v529 = vmul.f32 %v498, 1.442695
        %v530 = vpow.pop %v529
        %v531 = vadd.f32 %v500, 1.0
        %v532 = vadd.f32 %v502, 1.0
        %v533 = vadd.f32 %v504, 1.0
        %v534 = vadd.f32 %v506, 1.0
        %v535 = vadd.f32 %v508, 1.0
        %v536 = vadd.f32 %v510, 1.0
        %v537 = vadd.f32 %v512, 1.0
        %v538 = vadd.f32 %v514, 1.0
        %v539 = vadd.f32 %v516, 1.0
        %v540 = vadd.f32 %v518, 1.0
        %v541 = vadd.f32 %v520, 1.0
        %v542 = vadd.f32 %v522, 1.0
        %v543 = vadd.f32 %v524, 1.0
        %v544 = vadd.f32 %v526, 1.0
        %v545 = vadd.f32 %v528, 1.0
        %v546 = vadd.f32 %v530, 1.0
        %v547 = vrcp.pop %v531
        %v548 = vmul.f32 %v531, %v547
        %v549 = vsub.f32 1.0, %v548
        %v550 = vmul.f32 %v547, %v549
        %v551 = vadd.f32 %v547, %v550
        %vm552 = vweird.f32 %v531
        %vm553 = vweird.f32 %v547
        %vm554 = vmor %vm552, %vm553
        %v555 = vsel %vm554, %v547, %v551
        %v556 = vand.u32 2147483647, %v531
        %vm557 = vcmp.eq.f32.partialorder %v556, 8.507059e+37
        %v558 = vand.u32 %v531, 2147483648
        %v559 = vor.u32 1.1754944e-38, %v558
        %v560 = vsel %vm557, %v559, %v555
        %v561 = vmul.f32 1.0, %v560
        %v562 = vrcp.pop %v532
        %v563 = vmul.f32 %v532, %v562
        %v564 = vsub.f32 1.0, %v563
        %v565 = vmul.f32 %v562, %v564
        %v566 = vadd.f32 %v562, %v565
        %vm567 = vweird.f32 %v532
        %vm568 = vweird.f32 %v562
        %vm569 = vmor %vm567, %vm568
        %v570 = vsel %vm569, %v562, %v566
        %v571 = vand.u32 2147483647, %v532
        %vm572 = vcmp.eq.f32.partialorder %v571, 8.507059e+37
        %v573 = vand.u32 %v532, 2147483648
        %v574 = vor.u32 1.1754944e-38, %v573
        %v575 = vsel %vm572, %v574, %v570
        %v576 = vmul.f32 1.0, %v575
        %v577 = vrcp.pop %v533
        %v578 = vmul.f32 %v533, %v577
        %v579 = vsub.f32 1.0, %v578
        %v580 = vmul.f32 %v577, %v579
        %v581 = vadd.f32 %v577, %v580
        %vm582 = vweird.f32 %v533
        %vm583 = vweird.f32 %v577
        %vm584 = vmor %vm582, %vm583
        %v585 = vsel %vm584, %v577, %v581
        %v586 = vand.u32 2147483647, %v533
        %vm587 = vcmp.eq.f32.partialorder %v586, 8.507059e+37
        %v588 = vand.u32 %v533, 2147483648
        %v589 = vor.u32 1.1754944e-38, %v588
        %v590 = vsel %vm587, %v589, %v585
        %v591 = vmul.f32 1.0, %v590
        %v592 = vrcp.pop %v534
        %v593 = vmul.f32 %v534, %v592
        %v594 = vsub.f32 1.0, %v593
        %v595 = vmul.f32 %v592, %v594
        %v596 = vadd.f32 %v592, %v595
        %vm597 = vweird.f32 %v534
        %vm598 = vweird.f32 %v592
        %vm599 = vmor %vm597, %vm598
        %v600 = vsel %vm599, %v592, %v596
        %v601 = vand.u32 2147483647, %v534
        %vm602 = vcmp.eq.f32.partialorder %v601, 8.507059e+37
        %v603 = vand.u32 %v534, 2147483648
        %v604 = vor.u32 1.1754944e-38, %v603
        %v605 = vsel %vm602, %v604, %v600
        %v606 = vmul.f32 1.0, %v605
        %v607 = vrcp.pop %v535
        %v608 = vmul.f32 %v535, %v607
        %v609 = vsub.f32 1.0, %v608
        %v610 = vmul.f32 %v607, %v609
        %v611 = vadd.f32 %v607, %v610
        %vm612 = vweird.f32 %v535
        %vm613 = vweird.f32 %v607
        %vm614 = vmor %vm612, %vm613
        %v615 = vsel %vm614, %v607, %v611
        %v616 = vand.u32 2147483647, %v535
        %vm617 = vcmp.eq.f32.partialorder %v616, 8.507059e+37
        %v618 = vand.u32 %v535, 2147483648
        %v619 = vor.u32 1.1754944e-38, %v618
        %v620 = vsel %vm617, %v619, %v615
        %v621 = vmul.f32 1.0, %v620
        %v622 = vrcp.pop %v536
        %v623 = vmul.f32 %v536, %v622
        %v624 = vsub.f32 1.0, %v623
        %v625 = vmul.f32 %v622, %v624
        %v626 = vadd.f32 %v622, %v625
        %vm627 = vweird.f32 %v536
        %vm628 = vweird.f32 %v622
        %vm629 = vmor %vm627, %vm628
        %v630 = vsel %vm629, %v622, %v626
        %v631 = vand.u32 2147483647, %v536
        %vm632 = vcmp.eq.f32.partialorder %v631, 8.507059e+37
        %v633 = vand.u32 %v536, 2147483648
        %v634 = vor.u32 1.1754944e-38, %v633
        %v635 = vsel %vm632, %v634, %v630
        %v636 = vmul.f32 1.0, %v635
        %v637 = vrcp.pop %v537
        %v638 = vmul.f32 %v537, %v637
        %v639 = vsub.f32 1.0, %v638
        %v640 = vmul.f32 %v637, %v639
        %v641 = vadd.f32 %v637, %v640
        %vm642 = vweird.f32 %v537
        %vm643 = vweird.f32 %v637
        %vm644 = vmor %vm642, %vm643
        %v645 = vsel %vm644, %v637, %v641
        %v646 = vand.u32 2147483647, %v537
        %vm647 = vcmp.eq.f32.partialorder %v646, 8.507059e+37
        %v648 = vand.u32 %v537, 2147483648
        %v649 = vor.u32 1.1754944e-38, %v648
        %v650 = vsel %vm647, %v649, %v645
        %v651 = vmul.f32 1.0, %v650
        %v652 = vrcp.pop %v538
        %v653 = vmul.f32 %v538, %v652
        %v654 = vsub.f32 1.0, %v653
        %v655 = vmul.f32 %v652, %v654
        %v656 = vadd.f32 %v652, %v655
        %vm657 = vweird.f32 %v538
        %vm658 = vweird.f32 %v652
        %vm659 = vmor %vm657, %vm658
        %v660 = vsel %vm659, %v652, %v656
        %v661 = vand.u32 2147483647, %v538
        %vm662 = vcmp.eq.f32.partialorder %v661, 8.507059e+37
        %v663 = vand.u32 %v538, 2147483648
        %v664 = vor.u32 1.1754944e-38, %v663
        %v665 = vsel %vm662, %v664, %v660
        %v666 = vmul.f32 1.0, %v665
        %v667 = vrcp.pop %v539
        %v668 = vmul.f32 %v539, %v667
        %v669 = vsub.f32 1.0, %v668
        %v670 = vmul.f32 %v667, %v669
        %v671 = vadd.f32 %v667, %v670
        %vm672 = vweird.f32 %v539
        %vm673 = vweird.f32 %v667
        %vm674 = vmor %vm672, %vm673
        %v675 = vsel %vm674, %v667, %v671
        %v676 = vand.u32 2147483647, %v539
        %vm677 = vcmp.eq.f32.partialorder %v676, 8.507059e+37
        %v678 = vand.u32 %v539, 2147483648
        %v679 = vor.u32 1.1754944e-38, %v678
        %v680 = vsel %vm677, %v679, %v675
        %v681 = vmul.f32 1.0, %v680
        %v682 = vrcp.pop %v540
        %v683 = vmul.f32 %v540, %v682
        %v684 = vsub.f32 1.0, %v683
        %v685 = vmul.f32 %v682, %v684
        %v686 = vadd.f32 %v682, %v685
        %vm687 = vweird.f32 %v540
        %vm688 = vweird.f32 %v682
        %vm689 = vmor %vm687, %vm688
        %v690 = vsel %vm689, %v682, %v686
        %v691 = vand.u32 2147483647, %v540
        %vm692 = vcmp.eq.f32.partialorder %v691, 8.507059e+37
        %v693 = vand.u32 %v540, 2147483648
        %v694 = vor.u32 1.1754944e-38, %v693
        %v695 = vsel %vm692, %v694, %v690
        %v696 = vmul.f32 1.0, %v695
        %v697 = vrcp.pop %v541
        %v698 = vmul.f32 %v541, %v697
        %v699 = vsub.f32 1.0, %v698
        %v700 = vmul.f32 %v697, %v699
        %v701 = vadd.f32 %v697, %v700
        %vm702 = vweird.f32 %v541
        %vm703 = vweird.f32 %v697
        %vm704 = vmor %vm702, %vm703
        %v705 = vsel %vm704, %v697, %v701
        %v706 = vand.u32 2147483647, %v541
        %vm707 = vcmp.eq.f32.partialorder %v706, 8.507059e+37
        %v708 = vand.u32 %v541, 2147483648
        %v709 = vor.u32 1.1754944e-38, %v708
        %v710 = vsel %vm707, %v709, %v705
        %v711 = vmul.f32 1.0, %v710
        %v712 = vrcp.pop %v542
        %v713 = vmul.f32 %v542, %v712
        %v714 = vsub.f32 1.0, %v713
        %v715 = vmul.f32 %v712, %v714
        %v716 = vadd.f32 %v712, %v715
        %vm717 = vweird.f32 %v542
        %vm718 = vweird.f32 %v712
        %vm719 = vmor %vm717, %vm718
        %v720 = vsel %vm719, %v712, %v716
        %v721 = vand.u32 2147483647, %v542
        %vm722 = vcmp.eq.f32.partialorder %v721, 8.507059e+37
        %v723 = vand.u32 %v542, 2147483648
        %v724 = vor.u32 1.1754944e-38, %v723
        %v725 = vsel %vm722, %v724, %v720
        %v726 = vmul.f32 1.0, %v725
        %v727 = vrcp.pop %v543
        %v728 = vmul.f32 %v543, %v727
        %v729 = vsub.f32 1.0, %v728
        %v730 = vmul.f32 %v727, %v729
        %v731 = vadd.f32 %v727, %v730
        %vm732 = vweird.f32 %v543
        %vm733 = vweird.f32 %v727
        %vm734 = vmor %vm732, %vm733
        %v735 = vsel %vm734, %v727, %v731
        %v736 = vand.u32 2147483647, %v543
        %vm737 = vcmp.eq.f32.partialorder %v736, 8.507059e+37
        %v738 = vand.u32 %v543, 2147483648
        %v739 = vor.u32 1.1754944e-38, %v738
        %v740 = vsel %vm737, %v739, %v735
        %v741 = vmul.f32 1.0, %v740
        %v742 = vrcp.pop %v544
        %v743 = vmul.f32 %v544, %v742
        %v744 = vsub.f32 1.0, %v743
        %v745 = vmul.f32 %v742, %v744
        %v746 = vadd.f32 %v742, %v745
        %vm747 = vweird.f32 %v544
        %vm748 = vweird.f32 %v742
        %vm749 = vmor %vm747, %vm748
        %v750 = vsel %vm749, %v742, %v746
        %v751 = vand.u32 2147483647, %v544
        %vm752 = vcmp.eq.f32.partialorder %v751, 8.507059e+37
        %v753 = vand.u32 %v544, 2147483648
        %v754 = vor.u32 1.1754944e-38, %v753
        %v755 = vsel %vm752, %v754, %v750
        %v756 = vmul.f32 1.0, %v755
        %v757 = vrcp.pop %v545
        %v758 = vmul.f32 %v545, %v757
        %v759 = vsub.f32 1.0, %v758
        %v760 = vmul.f32 %v757, %v759
        %v761 = vadd.f32 %v757, %v760
        %vm762 = vweird.f32 %v545
        %vm763 = vweird.f32 %v757
        %vm764 = vmor %vm762, %vm763
        %v765 = vsel %vm764, %v757, %v761
        %v766 = vand.u32 2147483647, %v545
        %vm767 = vcmp.eq.f32.partialorder %v766, 8.507059e+37
        %v768 = vand.u32 %v545, 2147483648
        %v769 = vor.u32 1.1754944e-38, %v768
        %v770 = vsel %vm767, %v769, %v765
        %v771 = vmul.f32 1.0, %v770
        %v772 = vrcp.pop %v546
        %v773 = vmul.f32 %v546, %v772
        %v774 = vsub.f32 1.0, %v773
        %v775 = vmul.f32 %v772, %v774
        %v776 = vadd.f32 %v772, %v775
        %vm777 = vweird.f32 %v546
        %vm778 = vweird.f32 %v772
        %vm779 = vmor %vm777, %vm778
        %v780 = vsel %vm779, %v772, %v776
        %v781 = vand.u32 2147483647, %v546
        %vm782 = vcmp.eq.f32.partialorder %v781, 8.507059e+37
        %v783 = vand.u32 %v546, 2147483648
        %v784 = vor.u32 1.1754944e-38, %v783
        %v785 = vsel %vm782, %v784, %v780
        %v786 = vmul.f32 1.0, %v785
        %v787 = vmul.f32 %v385, %v561
        %v788 = vmul.f32 %v414, %v576
        %v789 = vmul.f32 %v443, %v591
        %v790 = vmul.f32 %v472, %v606
        %v791 = vmul.f32 %v388, %v621
        %v792 = vmul.f32 %v417, %v636
        %v793 = vmul.f32 %v446, %v651
        %v794 = vmul.f32 %v475, %v666
        %v795 = vmul.f32 %v391, %v681
        %v796 = vmul.f32 %v420, %v696
        %v797 = vmul.f32 %v449, %v711
        %v798 = vmul.f32 %v478, %v726
        %v799 = vmul.f32 %v394, %v741
        %v800 = vmul.f32 %v423, %v756
        %v801 = vmul.f32 %v452, %v771
        %v802 = vmul.f32 %v481, %v786
        %v803 = vld [vmem:[%s5] sm:$0xf]
        %v804 = vld [vmem:[%s6] sm:$0xf]
        %806 = vset.pattern.permute.xlu0 0
        %807 = vperm.xlu0 %806, %v804
        %v808 = vpop.permute.xlu0 %807
        %vm810 = vcmask 261120
        %v812 = vsel %vm810, %v803, 0
        %814 = vmatpush.msra.mxu0 0.0
        %815 = vmatpush.msra.mxu0 0.0
        %816 = vmatpush.msra.mxu0 0.0
        %817 = vmatpush.msra.mxu0 0.0
        %818 = vmatpush.msra.mxu0 0.0
        %819 = vmatpush.msra.mxu0 0.0
        %820 = vmatpush.msra.mxu0 0.0
        %821 = vmatpush.msra.mxu0 0.0
        %822 = vmatpush.msra.mxu0 0.0
        %823 = vmatpush.msra.mxu0 0.0
        %824 = vmatpush.msra.mxu0 0.0
        %825 = vmatpush.msra.mxu0 0.0
        %826 = vmatpush.msra.mxu0 %v799
        %827 = vmatpush.msra.mxu0 %v795
        %828 = vmatpush.msra.mxu0 %v791
        %829 = vmatpush.msra.mxu0 %v787
        %830 = vmatmul.f32.gmra.mxu0 %v812
        %v831 = vpop.f32.mrf.mxu0
        %v832 = vadd.f32 %v808, %v831
        %833 = vdwg.mxu0
        %834 = vmatpush.msra.mxu0 0.0
        %835 = vmatpush.msra.mxu0 0.0
        %836 = vmatpush.msra.mxu0 0.0
        %837 = vmatpush.msra.mxu0 0.0
        %838 = vmatpush.msra.mxu0 0.0
        %839 = vmatpush.msra.mxu0 0.0
        %840 = vmatpush.msra.mxu0 0.0
        %841 = vmatpush.msra.mxu0 0.0
        %842 = vmatpush.msra.mxu0 0.0
        %843 = vmatpush.msra.mxu0 0.0
        %844 = vmatpush.msra.mxu0 0.0
        %845 = vmatpush.msra.mxu0 0.0
        %846 = vmatpush.msra.mxu0 %v800
        %847 = vmatpush.msra.mxu0 %v796
        %848 = vmatpush.msra.mxu0 %v792
        %849 = vmatpush.msra.mxu0 %v788
        %850 = vmatmul.f32.gmra.mxu0 %v812
        %v851 = vpop.f32.mrf.mxu0
        %v852 = vadd.f32 %v808, %v851
        %853 = vdwg.mxu0
        %854 = vmatpush.msra.mxu0 0.0
        %855 = vmatpush.msra.mxu0 0.0
        %856 = vmatpush.msra.mxu0 0.0
        %857 = vmatpush.msra.mxu0 0.0
        %858 = vmatpush.msra.mxu0 0.0
        %859 = vmatpush.msra.mxu0 0.0
        %860 = vmatpush.msra.mxu0 0.0
        %861 = vmatpush.msra.mxu0 0.0
        %862 = vmatpush.msra.mxu0 0.0
        %863 = vmatpush.msra.mxu0 0.0
        %864 = vmatpush.msra.mxu0 0.0
        %865 = vmatpush.msra.mxu0 0.0
        %866 = vmatpush.msra.mxu0 %v801
        %867 = vmatpush.msra.mxu0 %v797
        %868 = vmatpush.msra.mxu0 %v793
        %869 = vmatpush.msra.mxu0 %v789
        %870 = vmatmul.f32.gmra.mxu0 %v812
        %v871 = vpop.f32.mrf.mxu0
        %v872 = vadd.f32 %v808, %v871
        %873 = vdwg.mxu0
        %874 = vmatpush.msra.mxu0 0.0
        %875 = vmatpush.msra.mxu0 0.0
        %876 = vmatpush.msra.mxu0 0.0
        %877 = vmatpush.msra.mxu0 0.0
        %878 = vmatpush.msra.mxu0 0.0
        %879 = vmatpush.msra.mxu0 0.0
        %880 = vmatpush.msra.mxu0 0.0
        %881 = vmatpush.msra.mxu0 0.0
        %882 = vmatpush.msra.mxu0 0.0
        %883 = vmatpush.msra.mxu0 0.0
        %884 = vmatpush.msra.mxu0 0.0
        %885 = vmatpush.msra.mxu0 0.0
        %886 = vmatpush.msra.mxu0 %v802
        %887 = vmatpush.msra.mxu0 %v798
        %888 = vmatpush.msra.mxu0 %v794
        %889 = vmatpush.msra.mxu0 %v790
        %890 = vmatmul.f32.gmra.mxu0 %v812
        %v891 = vpop.f32.mrf.mxu0
        %v892 = vadd.f32 %v808, %v891
        %893 = vdwg.mxu0
        %s894 = smul.u32 %s19, 128
        %s895 = sld [smem:[#allocation3 + %s894]]
        %s896 = sadd.s32 %s894, 1
        %s897 = sld [smem:[#allocation3 + %s896]]
        %s898 = sadd.s32 %s894, 2
        %s899 = sld [smem:[#allocation3 + %s898]]
        %s900 = sadd.s32 %s894, 3
        %s901 = sld [smem:[#allocation3 + %s900]]
        %s902 = sadd.s32 %s894, 4
        %s903 = sld [smem:[#allocation3 + %s902]]
        %v904 = vstv %s895
        %v905 = vmul.f32 %v904, %v306
        %v906 = vmul.f32 %v904, %v307
        %v907 = vstv %s897
        %v908 = vmul.f32 %v907, %v832
        %v909 = vmul.f32 %v907, %v852
        %v910 = vmul.f32 %v907, %v872
        %v911 = vmul.f32 %v907, %v892
        %v916 = vrot.slane %v909, 4
        %v917 = vrot.slane %v911, 4
        %v918 = vsel %vm358, %v908, %v916
        %v919 = vsel %vm358, %v910, %v917
        %v922 = vsub.f32 %v905, %v918
        %v923 = vsub.f32 %v906, %v919
        %v924 = vmax.f32 %v922, -1.0
        %v925 = vmax.f32 %v923, -1.0
        %v926 = vmin.f32 %v924, 1.0
        %v927 = vmin.f32 %v925, 1.0
        %v928 = vstv %s899
        %v929 = vmul.f32 %v928, %v926
        %v930 = vmul.f32 %v928, %v927
        %v931 = vstv %s901
        %v932 = vmul.f32 %v931, %v306
        %v933 = vmul.f32 %v931, %v307
        %v934 = vadd.f32 %v929, %v932
        %v935 = vadd.f32 %v930, %v933
        %v936 = vld [vmem:[%s292] sm:$0xff]
        %v937 = vld [vmem:[%s292 + $0x8] sm:$0xff]
        %v938 = vstv %s903
        %v939 = vmul.f32 %v938, %v936
        %v940 = vmul.f32 %v938, %v937
        %v941 = vadd.f32 %v934, %v939
        %v942 = vadd.f32 %v935, %v940
        %943 = vst [vmem:[#allocation2] sm:$0xff] %v941
        %944 = vst [vmem:[#allocation2 + $0x8] sm:$0xff] %v942
        %p945 = scmp.eq.s32.totalorder %s19, 7
        // Predicated region
        $region57: #{ddpm_sample.1} parent=47 // pred_check
          %p946 = pneg %p945
        $region58: #{ddpm_sample.1} parent=47 // pred_check_branch
          %948 = sbr.rel (%p946) target = $region60
        $region59: #{ddpm_sample.1} parent=47 // pred_region
          %v949 = vmax.f32 %v941, -1.0
          %v950 = vmax.f32 %v942, -1.0
          %v951 = vmin.f32 %v949, 1.0
          %v952 = vmin.f32 %v950, 1.0
          %v953 = vmul.f32 %v951, 0.5
          %v954 = vmul.f32 %v952, 0.5
          %v955 = vadd.f32 %v953, 0.5
          %v956 = vadd.f32 %v954, 0.5
          %957 = vst [vmem:[%s7] sm:$0xff] %v955
          %958 = vst [vmem:[%s7 + $0x8] sm:$0xff] %v956
        $region60: #{ddpm_sample.1} parent=47 // pred_fallthru
          _
        // Predicated region
        $region61: #{ddpm_sample.1} parent=47 // pred_check
          %p959 = pneg %p189
        $region62: #{ddpm_sample.1} parent=47 // pred_check_branch
          %961 = sbr.rel (%p959) target = $region64
        $region63: #{ddpm_sample.1} parent=47 // pred_region
          _
        $region64: #{ddpm_sample.1} parent=47 // pred_fallthru
          _
        // Predicated region
        $region65: #{ddpm_sample.1} parent=47 // pred_check
          %p962 = pneg %p189
        $region66: #{ddpm_sample.1} parent=47 // pred_check_branch
          %964 = sbr.rel (%p962) target = $region68
        $region67: #{ddpm_sample.1} parent=47 // pred_region
          _
        $region68: #{ddpm_sample.1} parent=47 // pred_fallthru
          _
      $region48: #{ddpm_sample.1} parent=5 // pred_fallthru
        _
      %p965 = scmp.le.s32.totalorder 2, %s14
      // Predicated region
      $region69: #{ddpm_sample.1} parent=5 // pred_check
        %p966 = pneg %p965
      $region70: #{ddpm_sample.1} parent=5 // pred_check_branch
        %968 = sbr.rel (%p966) target = $region72
      $region71: #{ddpm_sample.1} parent=5 // pred_region
        %s969 = ssub.s32 %s14, 2
      $region72: #{ddpm_sample.1} parent=5 // pred_fallthru
        _
    $region6: #{ddpm_sample.1} parent=1 // loop_footer
      %s18 = sadd.s32 1, %s14
    $region7: #{ddpm_sample.1} parent=1 // loop_footer_branch
      %13 = sbr.rel target = $region3
    $region8: #{ddpm_sample.1} parent=1 // loop_exit
      _
    %970 = vsyncpa [#allocation4], 1
    %s971 = scalar_lea.sflag [#allocation4], 1
    %972 = vsyncpa %s971, 1

</llo_original>
